<compile_context>
chip_gen: v6e
topology: v6e:2x2x1
jax: 0.10.0
libtpu: 0.0.40
codegen_flags: <defaults>
</compile_context>

<pallas_src>
import jax
import jax.numpy as jnp
from jax.experimental import pallas as pl
from jax.experimental.pallas import tpu as pltpu


# ---------------------------------------------------------------------------
# Kernels
# ---------------------------------------------------------------------------

def _fontclip_fused_kernel(x_ref, w_ref, b_ref, t_ref, dist_ref):
    """Fused variant: full (D, E) weight resident in VMEM, no reduction axis.

    Per batch tile i:
      feats = x[i] @ W + b                                  (MXU, f32 acc)
      cos   = <feats, t[i]> * rsqrt(max(||feats||^2, 1e-24))
      dist  = sqrt(clip(2 - 2 cos, 0, 4))                   (unit-vector chord)
    `input_normed` is never materialized (two row reductions instead).
    """
    feats = jnp.dot(x_ref[...], w_ref[...], preferred_element_type=jnp.float32)
    feats = feats + b_ref[...].astype(jnp.float32)
    t = t_ref[...].astype(jnp.float32)
    sq_norm = jnp.sum(feats * feats, axis=1, keepdims=True)
    dot_ft = jnp.sum(feats * t, axis=1, keepdims=True)
    cos = dot_ft * jax.lax.rsqrt(jnp.maximum(sq_norm, 1e-24))
    dist_ref[...] = jnp.sqrt(jnp.clip(2.0 - 2.0 * cos, 0.0, 4.0))


def _fontclip_acc_kernel(x_ref, w_ref, b_ref, t_ref, dist_ref, acc_ref):
    """K-tiled fallback for (D, E) weights too large to keep resident in VMEM."""
    k = pl.program_id(1)

    @pl.when(k == 0)
    def _():
        acc_ref[...] = jnp.zeros_like(acc_ref)

    acc_ref[...] += jnp.dot(x_ref[...], w_ref[...],
                            preferred_element_type=jnp.float32)

    @pl.when(k == pl.num_programs(1) - 1)
    def _():
        feats = acc_ref[...] + b_ref[...].astype(jnp.float32)
        t = t_ref[...].astype(jnp.float32)
        sq_norm = jnp.sum(feats * feats, axis=1, keepdims=True)
        dot_ft = jnp.sum(feats * t, axis=1, keepdims=True)
        cos = dot_ft * jax.lax.rsqrt(jnp.maximum(sq_norm, 1e-24))
        dist_ref[...] = jnp.sqrt(jnp.clip(2.0 - 2.0 * cos, 0.0, 4.0))


# ---------------------------------------------------------------------------
# Per-generation budgeting and tile planning
# ---------------------------------------------------------------------------

def _tpu_budget():
    """Return (vmem_limit_bytes, n_tensorcores) for the current TPU generation."""
    vmem_phys = None
    try:
        vmem_phys = int(pltpu.get_tpu_info().vmem_capacity_bytes)
    except Exception:
        vmem_phys = None
    kind = ""
    try:
        kind = jax.devices()[0].device_kind.lower()
    except Exception:
        pass
    if not vmem_phys or vmem_phys <= 0:
        vmem_phys = 64 * 1024 * 1024 if "v7" in kind else 128 * 1024 * 1024
    # ~102 MiB of 128 MiB physical on v5e/v6e; ~51 MiB of 64 MiB on v7x.
    vmem_limit = min(int(0.80 * vmem_phys), 112 * 1024 * 1024)
    n_cores = 2 if any(tag in kind for tag in ("v7", "v4", "v5p")) else 1
    return vmem_limit, n_cores


def _tile_candidates(total, cap, align, base):
    """Divisors of `total` <= cap obeying Pallas' (8,128) block rule, preferring
    `align` multiples (dtype packing); the full dim is always legal."""
    cap = min(cap, total)
    tier1, tier2 = [], []
    for t in range(cap, 0, -1):
        if total % t:
            continue
        if t == total or t % align == 0:
            tier1.append(t)
        elif t % base == 0:
            tier2.append(t)
    return (tier1 + tier2) or [total]


def _plan_tiles(B, D, E, x_isz, w_isz, t_isz, n_cores, vmem_limit):
    """Pick (tm, tk).  tk is None => fused plan (W fully resident, no k axis)."""
    budget = int(0.70 * vmem_limit)          # headroom for compiler scratch
    align_m = 16 if x_isz == 2 else 8        # bf16 sublane packing
    tm_goal = -(-B // n_cores)               # fewest batch tiles megacore allows
    tm_cands = _tile_candidates(B, tm_goal, align_m, 8)
    w_resident = D * E * w_isz
    epi = lambda tm: 4 * tm * E * 4          # allowance for f32 epilogue temps

    def fused_cost(tm):
        return (2 * tm * D * x_isz           # double-buffered x tile
                + w_resident                 # W fetched from HBM exactly once
                + 2 * tm * E * t_isz         # double-buffered text tile
                + 2 * E * 4 + 2 * tm * 4     # bias + dist tiles
                + epi(tm))

    for tm in tm_cands:
        if fused_cost(tm) <= budget:
            return tm, None

    # W too large for residency (or tiny VMEM): tile the D reduction.
    tk_cands = _tile_candidates(D, D, 128, 128)
    for tm in tm_cands:
        fixed = (tm * E * 4                  # f32 accumulator scratch
                 + 2 * tm * E * t_isz + 2 * E * 4 + 2 * tm * 4 + epi(tm))
        for tk in tk_cands:
            if fixed + 2 * tm * tk * x_isz + 2 * tk * E * w_isz <= budget:
                return tm, tk
    return tm_cands[-1], tk_cands[-1]        # last resort: smallest tiles


# ---------------------------------------------------------------------------
# pallas_call wrappers
# ---------------------------------------------------------------------------

def font_clip_distances(x_flat, w_proj, b_proj, embed_normed):
    B, D = x_flat.shape
    Dw, E = w_proj.shape
    assert Dw == D, (Dw, D)
    assert b_proj.shape == (1, E), b_proj.shape
    assert embed_normed.shape == (B, E), embed_normed.shape

    vmem_limit, n_cores = _tpu_budget()
    tm, tk = _plan_tiles(B, D, E,
                         x_flat.dtype.itemsize, w_proj.dtype.itemsize,
                         embed_normed.dtype.itemsize, n_cores, vmem_limit)
    nb = B // tm
    out_shape = jax.ShapeDtypeStruct((B, 1), jnp.float32)

    if tk is None:
        # Fused plan: no reduction grid axis, W resident in VMEM (constant
        # index_map -> single HBM fetch, even across batch tiles).
        grid_spec = pltpu.PrefetchScalarGridSpec(
            num_scalar_prefetch=0,
            grid=(nb,),
            in_specs=[
                pl.BlockSpec((tm, D), lambda i: (i, 0)),   # x tile (streams)
                pl.BlockSpec((D, E), lambda i: (0, 0)),    # W resident
                pl.BlockSpec((1, E), lambda i: (0, 0)),    # bias
                pl.BlockSpec((tm, E), lambda i: (i, 0)),   # embed_normed tile
            ],
            out_specs=pl.BlockSpec((tm, 1), lambda i: (i, 0)),
        )
        kernel = _fontclip_fused_kernel
        dim_sem = ("parallel",)
    else:
        nk = D // tk
        grid_spec = pltpu.PrefetchScalarGridSpec(
            num_scalar_prefetch=0,
            grid=(nb, nk),
            in_specs=[
                pl.BlockSpec((tm, tk), lambda i, k: (i, k)),   # x tile
                pl.BlockSpec((tk, E), lambda i, k: (k, 0)),    # W tile
                pl.BlockSpec((1, E), lambda i, k: (0, 0)),     # bias
                pl.BlockSpec((tm, E), lambda i, k: (i, 0)),    # embed_normed
            ],
            out_specs=pl.BlockSpec((tm, 1), lambda i, k: (i, 0)),
            scratch_shapes=[pltpu.VMEM((tm, E), jnp.float32)],
        )
        kernel = _fontclip_acc_kernel
        dim_sem = ("parallel", "arbitrary")

    return pl.pallas_call(
        kernel,
        out_shape=out_shape,
        grid_spec=grid_spec,
        compiler_params=pltpu.CompilerParams(
            dimension_semantics=dim_sem,
            vmem_limit_bytes=vmem_limit,
        ),
    )(x_flat, w_proj, b_proj, embed_normed)


@jax.jit
def font_clip_loss(img, w_proj, b_proj, embed_normed):
    """Mirrors FontCLIPLoss.forward(img)."""
    B = img.shape[0]
    x_flat = img.reshape(B, -1)
    dist = font_clip_distances(x_flat, w_proj, b_proj, embed_normed)[:, 0]
    # distance.div(2).arcsin().pow(2).mul(2).mean()  -- B scalars of glue.
    # Clamp arcsin's argument: fp rounding can push dist slightly past 2.0.
    half = jnp.clip(dist * 0.5, 0.0, 1.0)
    return jnp.mean(2.0 * jnp.square(jnp.arcsin(half)))


# ---------------------------------------------------------------------------
# Demo / self-check
# ---------------------------------------------------------------------------

if __name__ == "__main__":
    key = jax.random.PRNGKey(0)
    k_img, k_w, k_b, k_txt = jax.random.split(key, 4)

    # Small, module-consistent shapes.
    B, C, H, W = 8, 4, 16, 16       # NCHW image batch
    E = 128                         # CLIP embedding dim
    D = C * H * W                   # 1024

    # bf16 image / weights / text embeddings: halves HBM traffic; f32 math.
    img = jax.random.normal(k_img, (B, C, H, W),
                            dtype=jnp.float32).astype(jnp.bfloat16)
    w_proj = (jax.random.normal(k_w, (D, E), dtype=jnp.float32)
              * (1.0 / jnp.sqrt(D))).astype(jnp.bfloat16)
    b_proj = jax.random.normal(k_b, (1, E), dtype=jnp.float32) * 0.01

    # Deterministic synthetic text features, normalized as in __init__
    # (F.normalize(text_features, dim=1)), stored bf16 for the HBM stream.
    text_features = jax.random.normal(k_txt, (B, E), dtype=jnp.float32)
    t_norm = jnp.maximum(
        jnp.linalg.norm(text_features, axis=1, keepdims=True), 1e-12)
    embed_normed = (text_features / t_norm).astype(jnp.bfloat16)

    loss = font_clip_loss(img, w_proj, b_proj, embed_normed)
    jax.block_until_ready(loss)

    # Pure-JAX f32 reference on the same bf16-rounded inputs.
    xf = img.reshape(B, -1).astype(jnp.float32)
    wf = w_proj.astype(jnp.float32)
    tf = embed_normed.astype(jnp.float32)
    feats = xf @ wf + b_proj
    normed = feats / jnp.maximum(
        jnp.linalg.norm(feats, axis=1, keepdims=True), 1e-12)
    dref = jnp.linalg.norm(normed - tf, axis=1)
    lref = jnp.mean(2.0 * jnp.square(jnp.arcsin(jnp.clip(dref * 0.5, 0.0, 1.0))))

    assert loss.shape == ()
    assert bool(jnp.isfinite(loss))
    assert abs(float(loss) - float(lref)) < 5e-2 * max(1.0, abs(float(lref))), (
        float(loss), float(lref))
    print("KERNEL_OK")
</pallas_src>

<mosaic_0001>
module attributes {stable_mosaic.version = 11 : i64} {
  func.func @_fontclip_fused_kernel(%arg0: i32, %arg1: memref<8x1024xbf16, #tpu.memory_space<vmem>>, %arg2: memref<1024x128xbf16, #tpu.memory_space<vmem>>, %arg3: memref<1x128xf32, #tpu.memory_space<vmem>>, %arg4: memref<8x128xbf16, #tpu.memory_space<vmem>>, %arg5: memref<8x1xf32, #tpu.memory_space<vmem>>) attributes {dimension_semantics = [#tpu.dimension_semantics<parallel>], iteration_bounds = array<i64: 1>, scalar_prefetch = 0 : i64, scratch_operands = 0 : i64, tpu.core_type = #tpu.core_type<tc>, window_params = [{transform_indices = @transform_0, window_bounds = array<i64: 8, 1024>}, {pipeline_mode = #tpu.pipeline_mode<synchronous>, transform_indices = @transform_1, window_bounds = array<i64: 1024, 128>}, {pipeline_mode = #tpu.pipeline_mode<synchronous>, transform_indices = @transform_2, window_bounds = array<i64: 1, 128>}, {transform_indices = @transform_3, window_bounds = array<i64: 8, 128>}, {transform_indices = @transform_4, window_bounds = array<i64: 8, 1>}]} {
    %c0 = arith.constant 0 : index
    %c0_0 = arith.constant 0 : index
    %0 = vector.load %arg1[%c0, %c0_0] : memref<8x1024xbf16, #tpu.memory_space<vmem>>, vector<8x1024xbf16>
    %c0_1 = arith.constant 0 : index
    %c0_2 = arith.constant 0 : index
    %1 = vector.load %arg2[%c0_1, %c0_2] : memref<1024x128xbf16, #tpu.memory_space<vmem>>, vector<1024x128xbf16>
    %cst = arith.constant dense<0.000000e+00> : vector<8x128xf32>
    %2 = tpu.matmul %0, %1, %cst {dimension_numbers = #tpu.dot_dimension_numbers<[1], [0], [0], [1], [0, 0, 1, 1], [], []>} : vector<8x1024xbf16>, vector<1024x128xbf16>, vector<8x128xf32> -> vector<8x128xf32>
    %c0_3 = arith.constant 0 : index
    %c0_4 = arith.constant 0 : index
    %3 = vector.load %arg3[%c0_3, %c0_4] : memref<1x128xf32, #tpu.memory_space<vmem>>, vector<1x128xf32>
    %4 = vector.broadcast %3 : vector<1x128xf32> to vector<8x128xf32>
    %5 = arith.addf %2, %4 : vector<8x128xf32>
    %c0_5 = arith.constant 0 : index
    %c0_6 = arith.constant 0 : index
    %6 = vector.load %arg4[%c0_5, %c0_6] : memref<8x128xbf16, #tpu.memory_space<vmem>>, vector<8x128xbf16>
    %7 = arith.extf %6 : vector<8x128xbf16> to vector<8x128xf32>
    %8 = arith.mulf %5, %5 : vector<8x128xf32>
    %cst_7 = arith.constant dense<0.000000e+00> : vector<8xf32>
    %9 = vector.multi_reduction <add>, %8, %cst_7 [1] : vector<8x128xf32> to vector<8xf32>
    %10 = vector.shape_cast %9 : vector<8xf32> to vector<8x1xf32>
    %11 = arith.mulf %5, %7 : vector<8x128xf32>
    %cst_8 = arith.constant dense<0.000000e+00> : vector<8xf32>
    %12 = vector.multi_reduction <add>, %11, %cst_8 [1] : vector<8x128xf32> to vector<8xf32>
    %13 = vector.shape_cast %12 : vector<8xf32> to vector<8x1xf32>
    %cst_9 = arith.constant 1.000000e-24 : f32
    %14 = vector.broadcast %cst_9 : f32 to vector<8x1xf32>
    %15 = arith.maximumf %10, %14 : vector<8x1xf32>
    %16 = math.rsqrt %15 : vector<8x1xf32>
    %17 = arith.mulf %13, %16 : vector<8x1xf32>
    %cst_10 = arith.constant 2.000000e+00 : f32
    %18 = vector.broadcast %cst_10 : f32 to vector<8x1xf32>
    %19 = arith.mulf %18, %17 : vector<8x1xf32>
    %cst_11 = arith.constant 2.000000e+00 : f32
    %20 = vector.broadcast %cst_11 : f32 to vector<8x1xf32>
    %21 = arith.subf %20, %19 : vector<8x1xf32>
    %cst_12 = arith.constant 0.000000e+00 : f32
    %cst_13 = arith.constant 4.000000e+00 : f32
    %22 = vector.broadcast %cst_12 : f32 to vector<8x1xf32>
    %23 = arith.maximumf %22, %21 : vector<8x1xf32>
    %24 = vector.broadcast %cst_13 : f32 to vector<8x1xf32>
    %25 = arith.minimumf %24, %23 : vector<8x1xf32>
    %26 = math.sqrt %25 : vector<8x1xf32>
    %c0_14 = arith.constant 0 : index
    %c0_15 = arith.constant 0 : index
    %27 = vector.load %arg5[%c0_14, %c0_15] : memref<8x1xf32, #tpu.memory_space<vmem>>, vector<8x1xf32>
    tpu.vector_store %arg5[%c0_14, %c0_15], %26 {strides = array<i32>} : memref<8x1xf32, #tpu.memory_space<vmem>>, vector<8x1xf32>,
    return
  }
  func.func @transform_0(%arg0: i32) -> (i32, i32) {
    %c0_i32 = arith.constant 0 : i32
    %c0_i32_0 = arith.constant 0 : i32
    return %arg0, %c0_i32 : i32, i32
  }
  func.func @transform_1(%arg0: i32) -> (i32, i32) {
    %c0_i32 = arith.constant 0 : i32
    %c0_i32_0 = arith.constant 0 : i32
    %c0_i32_1 = arith.constant 0 : i32
    return %c0_i32, %c0_i32_0 : i32, i32
  }
  func.func @transform_2(%arg0: i32) -> (i32, i32) {
    %c0_i32 = arith.constant 0 : i32
    %c0_i32_0 = arith.constant 0 : i32
    %c0_i32_1 = arith.constant 0 : i32
    return %c0_i32, %c0_i32_0 : i32, i32
  }
  func.func @transform_3(%arg0: i32) -> (i32, i32) {
    %c0_i32 = arith.constant 0 : i32
    %c0_i32_0 = arith.constant 0 : i32
    return %arg0, %c0_i32 : i32, i32
  }
  func.func @transform_4(%arg0: i32) -> (i32, i32) {
    %c0_i32 = arith.constant 0 : i32
    %c0_i32_0 = arith.constant 0 : i32
    return %arg0, %c0_i32 : i32, i32
  }
}

</mosaic_0001>

<llo_original>
// kernel: font_clip_loss.1
$region0: #{font_clip_loss.1}
  #allocation0 [shape = 'u32[]', space=smem, size = 0x4, offset = 0x4, fixed_abs, tag = 'smem constant byte address 0x4 - core index']
  #allocation1 [shape = 'u32[144,128]{1,0:T(1,128)}', space=vmem, size = 0x12000, scoped, tag = 'internal scratch']
  %s0 = inlined_call_operand.vmem [shape: bf16[8,1024], index: 0, kind: input, shape index: {}]
  %s1 = inlined_call_operand.hbm [shape: bf16[1024,128], index: 1, kind: input, shape index: {}]
  %s2 = inlined_call_operand.vmem [shape: f32[1,128], index: 2, kind: input, shape index: {}]
  %s3 = inlined_call_operand.vmem [shape: bf16[8,128], index: 3, kind: input, shape index: {}]
  %s4 = inlined_call_operand.vmem [shape: f32[8,1], index: 4, kind: output, shape index: {}]
  %s5 = sld [smem:[#allocation0]]
  $region30: #{font_clip_loss.1} parent=0
    _
  %s7 = ssub.s32 1, %s5
  %s8 = scalar_select 0, %s7, %s5
  $region1: #{font_clip_loss.1} parent=0
    #allocation2 [shape = 'u8[262144]{0}', space=vmem, size = 0x40000, scoped, tag = 'input window, operand 1, single buffered']
    #allocation3 [shape = 's32[1]{0}', space=sflag, size = 0x4, scoped, tag = 'scoped memory for font_clip_loss.1']
    %9 = vsyncpa [#allocation3], 0
    // Predicated region
    $region2: #{font_clip_loss.1} parent=1 // pred_check
      _
    $region3: #{font_clip_loss.1} parent=1 // pred_check_branch
      %11 = sbr.rel (0) target = $region5
    $region4: #{font_clip_loss.1} parent=1 // pred_region
      _
    $region5: #{font_clip_loss.1} parent=1 // pred_fallthru
      _
    // Predicated region
    $region6: #{font_clip_loss.1} parent=1 // pred_check
      _
    $region7: #{font_clip_loss.1} parent=1 // pred_check_branch
      %13 = sbr.rel (0) target = $region9
    $region8: #{font_clip_loss.1} parent=1 // pred_region
      %s15 = ssub.s32 8192, 8192
      %16 = vsyncadd [#allocation3], %s15
      %s17 = sshll.u32 [#allocation2], 4
      %s18 = int_to_ptr.vmem [resolvable:$true] %s17
      %23 = dma.hbm_to_vmem [thread:$0]  %s1, 8192, %s18, [#allocation3], 64, 64, 4
    $region9: #{font_clip_loss.1} parent=1 // pred_fallthru
      _
    // Predicated region
    $region10: #{font_clip_loss.1} parent=1 // pred_check
      _
    $region11: #{font_clip_loss.1} parent=1 // pred_check_branch
      %25 = sbr.rel (0) target = $region13
    $region12: #{font_clip_loss.1} parent=1 // pred_region
      _
    $region13: #{font_clip_loss.1} parent=1 // pred_fallthru
      _
    // Predicated region
    $region14: #{font_clip_loss.1} parent=1 // pred_check
      _
    $region15: #{font_clip_loss.1} parent=1 // pred_check_branch
      %27 = sbr.rel (0) target = $region17
    $region16: #{font_clip_loss.1} parent=1 // pred_region
      _
    $region17: #{font_clip_loss.1} parent=1 // pred_fallthru
      _
    // Predicated region
    $region18: #{font_clip_loss.1} parent=1 // pred_check
      _
    $region19: #{font_clip_loss.1} parent=1 // pred_check_branch
      %29 = sbr.rel (0) target = $region21
    $region20: #{font_clip_loss.1} parent=1 // pred_region
      %30 = dma.done [#allocation3], 8192
    $region21: #{font_clip_loss.1} parent=1 // pred_fallthru
      _
    %v32 = vld [vmem:[%s0] sm:$0xff]
    %v33 = vld [vmem:[%s0 + $0x8] sm:$0xff]
    %v34 = vld [vmem:[%s0 + $0x10] sm:$0xff]
    %v35 = vld [vmem:[%s0 + $0x18] sm:$0xff]
    %v36 = vld [vmem:[#allocation2] sm:$0xf]
    %v37 = vld [vmem:[#allocation2 + $0x4] sm:$0xf]
    %v38 = vld [vmem:[#allocation2 + $0x8] sm:$0xf]
    %v39 = vld [vmem:[#allocation2 + $0xc] sm:$0xf]
    %v40 = vld [vmem:[#allocation2 + $0x10] sm:$0xf]
    %v41 = vld [vmem:[#allocation2 + $0x14] sm:$0xf]
    %v42 = vld [vmem:[#allocation2 + $0x18] sm:$0xf]
    %v43 = vld [vmem:[#allocation2 + $0x1c] sm:$0xf]
    %v44 = vld [vmem:[#allocation2 + $0x20] sm:$0xf]
    %v45 = vld [vmem:[#allocation2 + $0x24] sm:$0xf]
    %v46 = vld [vmem:[#allocation2 + $0x28] sm:$0xf]
    %v47 = vld [vmem:[#allocation2 + $0x2c] sm:$0xf]
    %v48 = vld [vmem:[#allocation2 + $0x30] sm:$0xf]
    %v49 = vld [vmem:[#allocation2 + $0x34] sm:$0xf]
    %v50 = vld [vmem:[#allocation2 + $0x38] sm:$0xf]
    %v51 = vld [vmem:[#allocation2 + $0x3c] sm:$0xf]
    %v52 = vld [vmem:[#allocation2 + $0x40] sm:$0xf]
    %v53 = vld [vmem:[#allocation2 + $0x44] sm:$0xf]
    %v54 = vld [vmem:[#allocation2 + $0x48] sm:$0xf]
    %v55 = vld [vmem:[#allocation2 + $0x4c] sm:$0xf]
    %v56 = vld [vmem:[#allocation2 + $0x50] sm:$0xf]
    %v57 = vld [vmem:[#allocation2 + $0x54] sm:$0xf]
    %v58 = vld [vmem:[#allocation2 + $0x58] sm:$0xf]
    %v59 = vld [vmem:[#allocation2 + $0x5c] sm:$0xf]
    %v60 = vld [vmem:[#allocation2 + $0x60] sm:$0xf]
    %v61 = vld [vmem:[#allocation2 + $0x64] sm:$0xf]
    %v62 = vld [vmem:[#allocation2 + $0x68] sm:$0xf]
    %v63 = vld [vmem:[#allocation2 + $0x6c] sm:$0xf]
    %v64 = vld [vmem:[#allocation2 + $0x70] sm:$0xf]
    %v65 = vld [vmem:[#allocation2 + $0x74] sm:$0xf]
    %v66 = vld [vmem:[#allocation2 + $0x78] sm:$0xf]
    %v67 = vld [vmem:[#allocation2 + $0x7c] sm:$0xf]
    %v68 = vld [vmem:[#allocation2 + $0x80] sm:$0xf]
    %v69 = vld [vmem:[#allocation2 + $0x84] sm:$0xf]
    %v70 = vld [vmem:[#allocation2 + $0x88] sm:$0xf]
    %v71 = vld [vmem:[#allocation2 + $0x8c] sm:$0xf]
    %v72 = vld [vmem:[#allocation2 + $0x90] sm:$0xf]
    %v73 = vld [vmem:[#allocation2 + $0x94] sm:$0xf]
    %v74 = vld [vmem:[#allocation2 + $0x98] sm:$0xf]
    %v75 = vld [vmem:[#allocation2 + $0x9c] sm:$0xf]
    %v76 = vld [vmem:[#allocation2 + $0xa0] sm:$0xf]
    %v77 = vld [vmem:[#allocation2 + $0xa4] sm:$0xf]
    %v78 = vld [vmem:[#allocation2 + $0xa8] sm:$0xf]
    %v79 = vld [vmem:[#allocation2 + $0xac] sm:$0xf]
    %v80 = vld [vmem:[#allocation2 + $0xb0] sm:$0xf]
    %v81 = vld [vmem:[#allocation2 + $0xb4] sm:$0xf]
    %v82 = vld [vmem:[#allocation2 + $0xb8] sm:$0xf]
    %v83 = vld [vmem:[#allocation2 + $0xbc] sm:$0xf]
    %v84 = vld [vmem:[#allocation2 + $0xc0] sm:$0xf]
    %v85 = vld [vmem:[#allocation2 + $0xc4] sm:$0xf]
    %v86 = vld [vmem:[#allocation2 + $0xc8] sm:$0xf]
    %v87 = vld [vmem:[#allocation2 + $0xcc] sm:$0xf]
    %v88 = vld [vmem:[#allocation2 + $0xd0] sm:$0xf]
    %v89 = vld [vmem:[#allocation2 + $0xd4] sm:$0xf]
    %v90 = vld [vmem:[#allocation2 + $0xd8] sm:$0xf]
    %v91 = vld [vmem:[#allocation2 + $0xdc] sm:$0xf]
    %v92 = vld [vmem:[#allocation2 + $0xe0] sm:$0xf]
    %v93 = vld [vmem:[#allocation2 + $0xe4] sm:$0xf]
    %v94 = vld [vmem:[#allocation2 + $0xe8] sm:$0xf]
    %v95 = vld [vmem:[#allocation2 + $0xec] sm:$0xf]
    %v96 = vld [vmem:[#allocation2 + $0xf0] sm:$0xf]
    %v97 = vld [vmem:[#allocation2 + $0xf4] sm:$0xf]
    %v98 = vld [vmem:[#allocation2 + $0xf8] sm:$0xf]
    %v99 = vld [vmem:[#allocation2 + $0xfc] sm:$0xf]
    %v100 = vld [vmem:[#allocation2 + $0x100] sm:$0xf]
    %v101 = vld [vmem:[#allocation2 + $0x104] sm:$0xf]
    %v102 = vld [vmem:[#allocation2 + $0x108] sm:$0xf]
    %v103 = vld [vmem:[#allocation2 + $0x10c] sm:$0xf]
    %v104 = vld [vmem:[#allocation2 + $0x110] sm:$0xf]
    %v105 = vld [vmem:[#allocation2 + $0x114] sm:$0xf]
    %v106 = vld [vmem:[#allocation2 + $0x118] sm:$0xf]
    %v107 = vld [vmem:[#allocation2 + $0x11c] sm:$0xf]
    %v108 = vld [vmem:[#allocation2 + $0x120] sm:$0xf]
    %v109 = vld [vmem:[#allocation2 + $0x124] sm:$0xf]
    %v110 = vld [vmem:[#allocation2 + $0x128] sm:$0xf]
    %v111 = vld [vmem:[#allocation2 + $0x12c] sm:$0xf]
    %v112 = vld [vmem:[#allocation2 + $0x130] sm:$0xf]
    %v113 = vld [vmem:[#allocation2 + $0x134] sm:$0xf]
    %v114 = vld [vmem:[#allocation2 + $0x138] sm:$0xf]
    %v115 = vld [vmem:[#allocation2 + $0x13c] sm:$0xf]
    %v116 = vld [vmem:[#allocation2 + $0x140] sm:$0xf]
    %v117 = vld [vmem:[#allocation2 + $0x144] sm:$0xf]
    %v118 = vld [vmem:[#allocation2 + $0x148] sm:$0xf]
    %v119 = vld [vmem:[#allocation2 + $0x14c] sm:$0xf]
    %v120 = vld [vmem:[#allocation2 + $0x150] sm:$0xf]
    %v121 = vld [vmem:[#allocation2 + $0x154] sm:$0xf]
    %v122 = vld [vmem:[#allocation2 + $0x158] sm:$0xf]
    %v123 = vld [vmem:[#allocation2 + $0x15c] sm:$0xf]
    %v124 = vld [vmem:[#allocation2 + $0x160] sm:$0xf]
    %v125 = vld [vmem:[#allocation2 + $0x164] sm:$0xf]
    %v126 = vld [vmem:[#allocation2 + $0x168] sm:$0xf]
    %v127 = vld [vmem:[#allocation2 + $0x16c] sm:$0xf]
    %v128 = vld [vmem:[#allocation2 + $0x170] sm:$0xf]
    %v129 = vld [vmem:[#allocation2 + $0x174] sm:$0xf]
    %v130 = vld [vmem:[#allocation2 + $0x178] sm:$0xf]
    %v131 = vld [vmem:[#allocation2 + $0x17c] sm:$0xf]
    %v132 = vld [vmem:[#allocation2 + $0x180] sm:$0xf]
    %v133 = vld [vmem:[#allocation2 + $0x184] sm:$0xf]
    %v134 = vld [vmem:[#allocation2 + $0x188] sm:$0xf]
    %v135 = vld [vmem:[#allocation2 + $0x18c] sm:$0xf]
    %v136 = vld [vmem:[#allocation2 + $0x190] sm:$0xf]
    %v137 = vld [vmem:[#allocation2 + $0x194] sm:$0xf]
    %v138 = vld [vmem:[#allocation2 + $0x198] sm:$0xf]
    %v139 = vld [vmem:[#allocation2 + $0x19c] sm:$0xf]
    %v140 = vld [vmem:[#allocation2 + $0x1a0] sm:$0xf]
    %v141 = vld [vmem:[#allocation2 + $0x1a4] sm:$0xf]
    %v142 = vld [vmem:[#allocation2 + $0x1a8] sm:$0xf]
    %v143 = vld [vmem:[#allocation2 + $0x1ac] sm:$0xf]
    %v144 = vld [vmem:[#allocation2 + $0x1b0] sm:$0xf]
    %v145 = vld [vmem:[#allocation2 + $0x1b4] sm:$0xf]
    %v146 = vld [vmem:[#allocation2 + $0x1b8] sm:$0xf]
    %v147 = vld [vmem:[#allocation2 + $0x1bc] sm:$0xf]
    %v148 = vld [vmem:[#allocation2 + $0x1c0] sm:$0xf]
    %v149 = vld [vmem:[#allocation2 + $0x1c4] sm:$0xf]
    %v150 = vld [vmem:[#allocation2 + $0x1c8] sm:$0xf]
    %v151 = vld [vmem:[#allocation2 + $0x1cc] sm:$0xf]
    %v152 = vld [vmem:[#allocation2 + $0x1d0] sm:$0xf]
    %v153 = vld [vmem:[#allocation2 + $0x1d4] sm:$0xf]
    %v154 = vld [vmem:[#allocation2 + $0x1d8] sm:$0xf]
    %v155 = vld [vmem:[#allocation2 + $0x1dc] sm:$0xf]
    %v156 = vld [vmem:[#allocation2 + $0x1e0] sm:$0xf]
    %v157 = vld [vmem:[#allocation2 + $0x1e4] sm:$0xf]
    %v158 = vld [vmem:[#allocation2 + $0x1e8] sm:$0xf]
    %v159 = vld [vmem:[#allocation2 + $0x1ec] sm:$0xf]
    %v160 = vld [vmem:[#allocation2 + $0x1f0] sm:$0xf]
    %v161 = vld [vmem:[#allocation2 + $0x1f4] sm:$0xf]
    %v162 = vld [vmem:[#allocation2 + $0x1f8] sm:$0xf]
    %v163 = vld [vmem:[#allocation2 + $0x1fc] sm:$0xf]
    %v164 = vld [vmem:[%s2] sm:$0x1]
    %v166 = vlaneseq
    %v167 = vshrl.u32 %v166, 7
    %v168 = vsub.s32 0, %v167
    %v169 = vrot.slane %v164, %v168
    %v175 = vunpack.c.l.b16 %v32
    %v176 = vunpack.c.h.b16 %v32
    %v177 = vunpack.c.l.b16 %v33
    %v178 = vunpack.c.h.b16 %v33
    %v179 = vunpack.c.l.b16 %v34
    %v180 = vunpack.c.h.b16 %v34
    %v181 = vunpack.c.l.b16 %v35
    %v182 = vunpack.c.h.b16 %v35
    %v183 = vpack.c.b16 %v175, %v175
    %v184 = vpack.c.b16 %v176, %v176
    %v185 = vpack.c.b16 %v177, %v177
    %v186 = vpack.c.b16 %v178, %v178
    %v187 = vpack.c.b16 %v179, %v179
    %v188 = vpack.c.b16 %v180, %v180
    %v189 = vpack.c.b16 %v181, %v181
    %v190 = vpack.c.b16 %v182, %v182
    %v327 = vunpack.c.l.b16 %v36
    %v328 = vunpack.c.l.b16 %v37
    %v329 = vunpack.c.l.b16 %v38
    %v330 = vunpack.c.l.b16 %v39
    %v331 = vunpack.c.l.b16 %v40
    %v332 = vunpack.c.l.b16 %v41
    %v333 = vunpack.c.l.b16 %v42
    %v334 = vunpack.c.l.b16 %v43
    %v335 = vunpack.c.l.b16 %v44
    %v336 = vunpack.c.l.b16 %v45
    %v337 = vunpack.c.l.b16 %v46
    %v338 = vunpack.c.l.b16 %v47
    %v339 = vunpack.c.l.b16 %v48
    %v340 = vunpack.c.l.b16 %v49
    %v341 = vunpack.c.l.b16 %v50
    %v342 = vunpack.c.l.b16 %v51
    %v343 = vunpack.c.l.b16 %v52
    %v344 = vunpack.c.l.b16 %v53
    %v345 = vunpack.c.l.b16 %v54
    %v346 = vunpack.c.l.b16 %v55
    %v347 = vunpack.c.l.b16 %v56
    %v348 = vunpack.c.l.b16 %v57
    %v349 = vunpack.c.l.b16 %v58
    %v350 = vunpack.c.l.b16 %v59
    %v351 = vunpack.c.l.b16 %v60
    %v352 = vunpack.c.l.b16 %v61
    %v353 = vunpack.c.l.b16 %v62
    %v354 = vunpack.c.l.b16 %v63
    %v355 = vunpack.c.l.b16 %v64
    %v356 = vunpack.c.l.b16 %v65
    %v357 = vunpack.c.l.b16 %v66
    %v358 = vunpack.c.l.b16 %v67
    %v359 = vunpack.c.l.b16 %v68
    %v360 = vunpack.c.l.b16 %v69
    %v361 = vunpack.c.l.b16 %v70
    %v362 = vunpack.c.l.b16 %v71
    %v363 = vunpack.c.l.b16 %v72
    %v364 = vunpack.c.l.b16 %v73
    %v365 = vunpack.c.l.b16 %v74
    %v366 = vunpack.c.l.b16 %v75
    %v367 = vunpack.c.l.b16 %v76
    %v368 = vunpack.c.l.b16 %v77
    %v369 = vunpack.c.l.b16 %v78
    %v370 = vunpack.c.l.b16 %v79
    %v371 = vunpack.c.l.b16 %v80
    %v372 = vunpack.c.l.b16 %v81
    %v373 = vunpack.c.l.b16 %v82
    %v374 = vunpack.c.l.b16 %v83
    %v375 = vunpack.c.l.b16 %v84
    %v376 = vunpack.c.l.b16 %v85
    %v377 = vunpack.c.l.b16 %v86
    %v378 = vunpack.c.l.b16 %v87
    %v379 = vunpack.c.l.b16 %v88
    %v380 = vunpack.c.l.b16 %v89
    %v381 = vunpack.c.l.b16 %v90
    %v382 = vunpack.c.l.b16 %v91
    %v383 = vunpack.c.l.b16 %v92
    %v384 = vunpack.c.l.b16 %v93
    %v385 = vunpack.c.l.b16 %v94
    %v386 = vunpack.c.l.b16 %v95
    %v387 = vunpack.c.l.b16 %v96
    %v388 = vunpack.c.l.b16 %v97
    %v389 = vunpack.c.l.b16 %v98
    %v390 = vunpack.c.l.b16 %v99
    %v391 = vunpack.c.l.b16 %v100
    %v392 = vunpack.c.l.b16 %v101
    %v393 = vunpack.c.l.b16 %v102
    %v394 = vunpack.c.l.b16 %v103
    %v395 = vunpack.c.l.b16 %v104
    %v396 = vunpack.c.l.b16 %v105
    %v397 = vunpack.c.l.b16 %v106
    %v398 = vunpack.c.l.b16 %v107
    %v399 = vunpack.c.l.b16 %v108
    %v400 = vunpack.c.l.b16 %v109
    %v401 = vunpack.c.l.b16 %v110
    %v402 = vunpack.c.l.b16 %v111
    %v403 = vunpack.c.l.b16 %v112
    %v404 = vunpack.c.l.b16 %v113
    %v405 = vunpack.c.l.b16 %v114
    %v406 = vunpack.c.l.b16 %v115
    %v407 = vunpack.c.l.b16 %v116
    %v408 = vunpack.c.l.b16 %v117
    %v409 = vunpack.c.l.b16 %v118
    %v410 = vunpack.c.l.b16 %v119
    %v411 = vunpack.c.l.b16 %v120
    %v412 = vunpack.c.l.b16 %v121
    %v413 = vunpack.c.l.b16 %v122
    %v414 = vunpack.c.l.b16 %v123
    %v415 = vunpack.c.l.b16 %v124
    %v416 = vunpack.c.l.b16 %v125
    %v417 = vunpack.c.l.b16 %v126
    %v418 = vunpack.c.l.b16 %v127
    %v419 = vunpack.c.l.b16 %v128
    %v420 = vunpack.c.l.b16 %v129
    %v421 = vunpack.c.l.b16 %v130
    %v422 = vunpack.c.l.b16 %v131
    %v423 = vunpack.c.l.b16 %v132
    %v424 = vunpack.c.l.b16 %v133
    %v425 = vunpack.c.l.b16 %v134
    %v426 = vunpack.c.l.b16 %v135
    %v427 = vunpack.c.l.b16 %v136
    %v428 = vunpack.c.l.b16 %v137
    %v429 = vunpack.c.l.b16 %v138
    %v430 = vunpack.c.l.b16 %v139
    %v431 = vunpack.c.l.b16 %v140
    %v432 = vunpack.c.l.b16 %v141
    %v433 = vunpack.c.l.b16 %v142
    %v434 = vunpack.c.l.b16 %v143
    %v435 = vunpack.c.l.b16 %v144
    %v436 = vunpack.c.l.b16 %v145
    %v437 = vunpack.c.l.b16 %v146
    %v438 = vunpack.c.l.b16 %v147
    %v439 = vunpack.c.l.b16 %v148
    %v440 = vunpack.c.l.b16 %v149
    %v441 = vunpack.c.l.b16 %v150
    %v442 = vunpack.c.l.b16 %v151
    %v443 = vunpack.c.l.b16 %v152
    %v444 = vunpack.c.l.b16 %v153
    %v445 = vunpack.c.l.b16 %v154
    %v446 = vunpack.c.l.b16 %v155
    %v447 = vunpack.c.l.b16 %v156
    %v448 = vunpack.c.l.b16 %v157
    %v449 = vunpack.c.l.b16 %v158
    %v450 = vunpack.c.l.b16 %v159
    %v451 = vunpack.c.l.b16 %v160
    %v452 = vunpack.c.l.b16 %v161
    %v453 = vunpack.c.l.b16 %v162
    %v454 = vunpack.c.l.b16 %v163
    %v455 = vpack.c.b16 %v328, %v327
    %v456 = vpack.c.b16 %v330, %v329
    %v457 = vpack.c.b16 %v332, %v331
    %v458 = vpack.c.b16 %v334, %v333
    %v459 = vpack.c.b16 %v336, %v335
    %v460 = vpack.c.b16 %v338, %v337
    %v461 = vpack.c.b16 %v340, %v339
    %v462 = vpack.c.b16 %v342, %v341
    %v463 = vpack.c.b16 %v344, %v343
    %v464 = vpack.c.b16 %v346, %v345
    %v465 = vpack.c.b16 %v348, %v347
    %v466 = vpack.c.b16 %v350, %v349
    %v467 = vpack.c.b16 %v352, %v351
    %v468 = vpack.c.b16 %v354, %v353
    %v469 = vpack.c.b16 %v356, %v355
    %v470 = vpack.c.b16 %v358, %v357
    %v471 = vpack.c.b16 %v360, %v359
    %v472 = vpack.c.b16 %v362, %v361
    %v473 = vpack.c.b16 %v364, %v363
    %v474 = vpack.c.b16 %v366, %v365
    %v475 = vpack.c.b16 %v368, %v367
    %v476 = vpack.c.b16 %v370, %v369
    %v477 = vpack.c.b16 %v372, %v371
    %v478 = vpack.c.b16 %v374, %v373
    %v479 = vpack.c.b16 %v376, %v375
    %v480 = vpack.c.b16 %v378, %v377
    %v481 = vpack.c.b16 %v380, %v379
    %v482 = vpack.c.b16 %v382, %v381
    %v483 = vpack.c.b16 %v384, %v383
    %v484 = vpack.c.b16 %v386, %v385
    %v485 = vpack.c.b16 %v388, %v387
    %v486 = vpack.c.b16 %v390, %v389
    %v487 = vpack.c.b16 %v392, %v391
    %v488 = vpack.c.b16 %v394, %v393
    %v489 = vpack.c.b16 %v396, %v395
    %v490 = vpack.c.b16 %v398, %v397
    %v491 = vpack.c.b16 %v400, %v399
    %v492 = vpack.c.b16 %v402, %v401
    %v493 = vpack.c.b16 %v404, %v403
    %v494 = vpack.c.b16 %v406, %v405
    %v495 = vpack.c.b16 %v408, %v407
    %v496 = vpack.c.b16 %v410, %v409
    %v497 = vpack.c.b16 %v412, %v411
    %v498 = vpack.c.b16 %v414, %v413
    %v499 = vpack.c.b16 %v416, %v415
    %v500 = vpack.c.b16 %v418, %v417
    %v501 = vpack.c.b16 %v420, %v419
    %v502 = vpack.c.b16 %v422, %v421
    %v503 = vpack.c.b16 %v424, %v423
    %v504 = vpack.c.b16 %v426, %v425
    %v505 = vpack.c.b16 %v428, %v427
    %v506 = vpack.c.b16 %v430, %v429
    %v507 = vpack.c.b16 %v432, %v431
    %v508 = vpack.c.b16 %v434, %v433
    %v509 = vpack.c.b16 %v436, %v435
    %v510 = vpack.c.b16 %v438, %v437
    %v511 = vpack.c.b16 %v440, %v439
    %v512 = vpack.c.b16 %v442, %v441
    %v513 = vpack.c.b16 %v444, %v443
    %v514 = vpack.c.b16 %v446, %v445
    %v515 = vpack.c.b16 %v448, %v447
    %v516 = vpack.c.b16 %v450, %v449
    %v517 = vpack.c.b16 %v452, %v451
    %v518 = vpack.c.b16 %v454, %v453
    %583 = vmatprep.subr.bf16.mxu0 0
    %584 = vmatpush1.bf16.msra.mxu0 %v462
    %585 = vmatprep.subr.bf16.mxu0 0
    %586 = vmatpush1.bf16.msra.mxu0 %v461
    %587 = vmatprep.subr.bf16.mxu0 0
    %588 = vmatpush1.bf16.msra.mxu0 %v460
    %589 = vmatprep.subr.bf16.mxu0 0
    %590 = vmatpush1.bf16.msra.mxu0 %v459
    %591 = vmatprep.subr.bf16.mxu0 0
    %592 = vmatpush1.bf16.msra.mxu0 %v458
    %593 = vmatprep.subr.bf16.mxu0 0
    %594 = vmatpush1.bf16.msra.mxu0 %v457
    %595 = vmatprep.subr.bf16.mxu0 0
    %596 = vmatpush1.bf16.msra.mxu0 %v456
    %597 = vmatprep.subr.bf16.mxu0 0
    %598 = vmatpush1.bf16.msra.mxu0 %v455
    %599 = vmatprep.subr.bf16.mxu0 0
    %600 = vmatpush2.bf16.msra.mxu0 %v470
    %601 = vmatprep.subr.bf16.mxu0 0
    %602 = vmatpush2.bf16.msra.mxu0 %v469
    %603 = vmatprep.subr.bf16.mxu0 0
    %604 = vmatpush2.bf16.msra.mxu0 %v468
    %605 = vmatprep.subr.bf16.mxu0 0
    %606 = vmatpush2.bf16.msra.mxu0 %v467
    %607 = vmatprep.subr.bf16.mxu0 0
    %608 = vmatpush2.bf16.msra.mxu0 %v466
    %609 = vmatprep.subr.bf16.mxu0 0
    %610 = vmatpush2.bf16.msra.mxu0 %v465
    %611 = vmatprep.subr.bf16.mxu0 0
    %612 = vmatpush2.bf16.msra.mxu0 %v464
    %613 = vmatprep.subr.bf16.mxu0 0
    %614 = vmatpush2.bf16.msra.mxu0 %v463
    %615 = vmatprep.mubr.bf16.mxu0 %v184
    %616 = vmatmul.mubr.bf16.gmra.mxu0 %v183
    %v617 = vpop.f32.mrf.mxu0
    %v618 = vadd.f32 %v169, %v617
    %v619 = vpop.f32.mrf.mxu0
    %v620 = vpop.f32.mrf.mxu0
    %v621 = vpop.f32.mrf.mxu0
    %622 = vdwg.mxu0
    %623 = vmatprep.subr.bf16.mxu0 0
    %624 = vmatpush1.bf16.msra.mxu0 %v478
    %625 = vmatprep.subr.bf16.mxu0 0
    %626 = vmatpush1.bf16.msra.mxu0 %v477
    %627 = vmatprep.subr.bf16.mxu0 0
    %628 = vmatpush1.bf16.msra.mxu0 %v476
    %629 = vmatprep.subr.bf16.mxu0 0
    %630 = vmatpush1.bf16.msra.mxu0 %v475
    %631 = vmatprep.subr.bf16.mxu0 0
    %632 = vmatpush1.bf16.msra.mxu0 %v474
    %633 = vmatprep.subr.bf16.mxu0 0
    %634 = vmatpush1.bf16.msra.mxu0 %v473
    %635 = vmatprep.subr.bf16.mxu0 0
    %636 = vmatpush1.bf16.msra.mxu0 %v472
    %637 = vmatprep.subr.bf16.mxu0 0
    %638 = vmatpush1.bf16.msra.mxu0 %v471
    %639 = vmatprep.subr.bf16.mxu0 0
    %640 = vmatpush2.bf16.msra.mxu0 %v486
    %641 = vmatprep.subr.bf16.mxu0 0
    %642 = vmatpush2.bf16.msra.mxu0 %v485
    %643 = vmatprep.subr.bf16.mxu0 0
    %644 = vmatpush2.bf16.msra.mxu0 %v484
    %645 = vmatprep.subr.bf16.mxu0 0
    %646 = vmatpush2.bf16.msra.mxu0 %v483
    %647 = vmatprep.subr.bf16.mxu0 0
    %648 = vmatpush2.bf16.msra.mxu0 %v482
    %649 = vmatprep.subr.bf16.mxu0 0
    %650 = vmatpush2.bf16.msra.mxu0 %v481
    %651 = vmatprep.subr.bf16.mxu0 0
    %652 = vmatpush2.bf16.msra.mxu0 %v480
    %653 = vmatprep.subr.bf16.mxu0 0
    %654 = vmatpush2.bf16.msra.mxu0 %v479
    %655 = vmatprep.mubr.bf16.mxu0 %v186
    %656 = vmatmul.mubr.bf16.gmra.mxu0 %v185
    %v657 = vpop.f32.mrf.mxu0
    %v658 = vadd.f32 %v618, %v657
    %v659 = vpop.f32.mrf.mxu0
    %v660 = vpop.f32.mrf.mxu0
    %v661 = vpop.f32.mrf.mxu0
    %662 = vdwg.mxu0
    %663 = vmatprep.subr.bf16.mxu0 0
    %664 = vmatpush1.bf16.msra.mxu0 %v494
    %665 = vmatprep.subr.bf16.mxu0 0
    %666 = vmatpush1.bf16.msra.mxu0 %v493
    %667 = vmatprep.subr.bf16.mxu0 0
    %668 = vmatpush1.bf16.msra.mxu0 %v492
    %669 = vmatprep.subr.bf16.mxu0 0
    %670 = vmatpush1.bf16.msra.mxu0 %v491
    %671 = vmatprep.subr.bf16.mxu0 0
    %672 = vmatpush1.bf16.msra.mxu0 %v490
    %673 = vmatprep.subr.bf16.mxu0 0
    %674 = vmatpush1.bf16.msra.mxu0 %v489
    %675 = vmatprep.subr.bf16.mxu0 0
    %676 = vmatpush1.bf16.msra.mxu0 %v488
    %677 = vmatprep.subr.bf16.mxu0 0
    %678 = vmatpush1.bf16.msra.mxu0 %v487
    %679 = vmatprep.subr.bf16.mxu0 0
    %680 = vmatpush2.bf16.msra.mxu0 %v502
    %681 = vmatprep.subr.bf16.mxu0 0
    %682 = vmatpush2.bf16.msra.mxu0 %v501
    %683 = vmatprep.subr.bf16.mxu0 0
    %684 = vmatpush2.bf16.msra.mxu0 %v500
    %685 = vmatprep.subr.bf16.mxu0 0
    %686 = vmatpush2.bf16.msra.mxu0 %v499
    %687 = vmatprep.subr.bf16.mxu0 0
    %688 = vmatpush2.bf16.msra.mxu0 %v498
    %689 = vmatprep.subr.bf16.mxu0 0
    %690 = vmatpush2.bf16.msra.mxu0 %v497
    %691 = vmatprep.subr.bf16.mxu0 0
    %692 = vmatpush2.bf16.msra.mxu0 %v496
    %693 = vmatprep.subr.bf16.mxu0 0
    %694 = vmatpush2.bf16.msra.mxu0 %v495
    %695 = vmatprep.mubr.bf16.mxu0 %v188
    %696 = vmatmul.mubr.bf16.gmra.mxu0 %v187
    %v697 = vpop.f32.mrf.mxu0
    %v698 = vadd.f32 %v658, %v697
    %v699 = vpop.f32.mrf.mxu0
    %v700 = vpop.f32.mrf.mxu0
    %v701 = vpop.f32.mrf.mxu0
    %702 = vdwg.mxu0
    %703 = vmatprep.subr.bf16.mxu0 0
    %704 = vmatpush1.bf16.msra.mxu0 %v510
    %705 = vmatprep.subr.bf16.mxu0 0
    %706 = vmatpush1.bf16.msra.mxu0 %v509
    %707 = vmatprep.subr.bf16.mxu0 0
    %708 = vmatpush1.bf16.msra.mxu0 %v508
    %709 = vmatprep.subr.bf16.mxu0 0
    %710 = vmatpush1.bf16.msra.mxu0 %v507
    %711 = vmatprep.subr.bf16.mxu0 0
    %712 = vmatpush1.bf16.msra.mxu0 %v506
    %713 = vmatprep.subr.bf16.mxu0 0
    %714 = vmatpush1.bf16.msra.mxu0 %v505
    %715 = vmatprep.subr.bf16.mxu0 0
    %716 = vmatpush1.bf16.msra.mxu0 %v504
    %717 = vmatprep.subr.bf16.mxu0 0
    %718 = vmatpush1.bf16.msra.mxu0 %v503
    %719 = vmatprep.subr.bf16.mxu0 0
    %720 = vmatpush2.bf16.msra.mxu0 %v518
    %721 = vmatprep.subr.bf16.mxu0 0
    %722 = vmatpush2.bf16.msra.mxu0 %v517
    %723 = vmatprep.subr.bf16.mxu0 0
    %724 = vmatpush2.bf16.msra.mxu0 %v516
    %725 = vmatprep.subr.bf16.mxu0 0
    %726 = vmatpush2.bf16.msra.mxu0 %v515
    %727 = vmatprep.subr.bf16.mxu0 0
    %728 = vmatpush2.bf16.msra.mxu0 %v514
    %729 = vmatprep.subr.bf16.mxu0 0
    %730 = vmatpush2.bf16.msra.mxu0 %v513
    %731 = vmatprep.subr.bf16.mxu0 0
    %732 = vmatpush2.bf16.msra.mxu0 %v512
    %733 = vmatprep.subr.bf16.mxu0 0
    %734 = vmatpush2.bf16.msra.mxu0 %v511
    %735 = vmatprep.mubr.bf16.mxu0 %v190
    %736 = vmatmul.mubr.bf16.gmra.mxu0 %v189
    %v737 = vpop.f32.mrf.mxu0
    %v738 = vadd.f32 %v698, %v737
    %v739 = vpop.f32.mrf.mxu0
    %v740 = vpop.f32.mrf.mxu0
    %v741 = vpop.f32.mrf.mxu0
    %742 = vdwg.mxu0
    %v743 = vld [vmem:[%s3] sm:$0xf]
    %v744 = vunpack.c.l.bf16 %v743
    %v745 = vmul.f32 %v738, %v738
    %746 = vadd.xlane.f32.xlu0 %v745
    %v747 = vpop.xlane.xlu0 %746
    %v748 = vmul.f32 %v738, %v744
    %749 = vadd.xlane.f32.xlu0 %v748
    %v750 = vpop.xlane.xlu0 %749
    %v751 = vmax.f32 %v747, 1e-24
    %v752 = vrsqrt.pop %v751
    %v753 = vmul.f32 %v750, %v752
    %v754 = vmul.f32 %v753, 2.0
    %v755 = vsub.f32 2.0, %v754
    %v756 = vmax.f32 %v755, 0.0
    %v757 = vmin.f32 %v756, 4.0
    %v758 = vrsqrt.pop %v757
    %v759 = vmul.f32 %v757, %v758
    %vm760 = vcmp.eq.f32.partialorder %v757, inf
    %v761 = vsel %vm760, %v757, %v759
    %vm762 = vcmp.eq.f32.partialorder %v757, 0.0
    %v763 = vand.u32 %v757, 2147483648
    %v764 = vsel %vm762, %v763, %v761
    %vm765 = vcmask 7168
    %766 = vst.msk [vmem:[%s4] sm:$0xff] %vm765, %v764
    // Predicated region
    $region22: #{font_clip_loss.1} parent=1 // pred_check
      _
    $region23: #{font_clip_loss.1} parent=1 // pred_check_branch
      %768 = sbr.rel (0) target = $region25
    $region24: #{font_clip_loss.1} parent=1 // pred_region
      _
    $region25: #{font_clip_loss.1} parent=1 // pred_fallthru
      _
    // Predicated region
    $region26: #{font_clip_loss.1} parent=1 // pred_check
      _
    $region27: #{font_clip_loss.1} parent=1 // pred_check_branch
      %770 = sbr.rel (0) target = $region29
    $region28: #{font_clip_loss.1} parent=1 // pred_region
      _
    $region29: #{font_clip_loss.1} parent=1 // pred_fallthru
      _
    %771 = vsyncpa [#allocation3], 1

</llo_original>
